<compile_context>
chip_gen: v5e
topology: v5e:2x2
jax: 0.10.0
libtpu: 0.0.40
codegen_flags: <defaults>
</compile_context>

<pallas_src>
import jax
import jax.numpy as jnp
from jax.experimental import pallas as pl
from jax.experimental.pallas import tpu as pltpu


def _round_up(n, m):
    return ((n + m - 1) // m) * m


def _cdiv(a, b):
    return (a + b - 1) // b


def policy_kernel(x_ref, w1_ref, b1_ref, w2_ref, b2_ref, out_ref):
    # x:  (TB, D_in)  f32          w1: (D_in, H)  bf16    b1: (1, H)     f32
    # w2: (H, D_out)  bf16         b2: (1, D_out) f32     out:(TB, D_out) f32
    # In-kernel bf16 cast of x: free VPU filler, saves an extra HBM pass.
    x = x_ref[...].astype(jnp.bfloat16)

    # Linear 1 + ReLU  (bf16 MXU operands, f32 accumulation)
    h = jnp.dot(x, w1_ref[...], preferred_element_type=jnp.float32)
    h = jnp.maximum(h + b1_ref[...], 0.0)

    # Linear 2 (bf16 operands, f32 accumulation) -- only the real D_out columns
    logits = jnp.dot(h.astype(jnp.bfloat16), w2_ref[...],
                     preferred_element_type=jnp.float32)
    logits = logits + b2_ref[...]

    # Numerically stable softmax along the last axis. Exact divide so every
    # row sums to 1 at f32 precision (approx reciprocal failed the 1e-3 check).
    m = jnp.max(logits, axis=-1, keepdims=True)
    e = jnp.exp(logits - m)
    denom = jnp.sum(e, axis=-1, keepdims=True)
    out_ref[...] = (e / denom).astype(out_ref.dtype)


def prepare_policy_params(w1, b1, w2, b2):
    """One-time parameter prep (hoisted out of the hot path): bf16 matmul
    weights, f32 biases, no output-dim padding."""
    return (w1.astype(jnp.bfloat16),
            b1.reshape(1, -1).astype(jnp.float32),
            w2.astype(jnp.bfloat16),
            b2.reshape(1, -1).astype(jnp.float32))


def policy_forward(x, params, *, block_b=2048):
    """x: (B, D_in) f32; params: output of prepare_policy_params."""
    w1_bf, b1_f32, w2_bf, b2_f32 = params
    B, D_in = x.shape
    H = w1_bf.shape[1]
    D_out = w2_bf.shape[1]

    # --- batch tiling ---------------------------------------------------------
    # Large tiles amortize per-grid-step overhead (~0.35 us/step); force >= 2
    # steps when B > 16 so the "parallel" grid axis engages both v7x TCs.
    # Weights are tiny and VMEM-resident, so even TB in the thousands keeps the
    # live VMEM footprint at a few MiB (well under v7x's 64 MiB).
    n_steps = max(1, _cdiv(B, block_b))
    if B > 16:
        n_steps = max(n_steps, 2)
    TB = max(16, _round_up(_cdiv(B, n_steps), 16))   # multiple of 16 (bf16 sublanes)
    Bp = _round_up(B, TB)
    x_in = x if Bp == B else jnp.pad(x, ((0, Bp - B), (0, 0)))
    grid = (Bp // TB,)

    flops = 2 * Bp * D_in * H + 2 * Bp * H * D_out
    bytes_accessed = (Bp * D_in * 4 + w1_bf.size * 2 + w2_bf.size * 2
                      + b1_f32.size * 4 + b2_f32.size * 4 + Bp * D_out * 4)

    out = pl.pallas_call(
        policy_kernel,
        out_shape=jax.ShapeDtypeStruct((Bp, D_out), jnp.float32),
        grid=grid,
        in_specs=[
            pl.BlockSpec((TB, D_in), lambda i: (i, 0)),    # x: streamed per step
            pl.BlockSpec((D_in, H), lambda i: (0, 0)),     # w1: VMEM-resident
            pl.BlockSpec((1, H), lambda i: (0, 0)),        # b1: VMEM-resident
            pl.BlockSpec((H, D_out), lambda i: (0, 0)),    # w2: VMEM-resident
            pl.BlockSpec((1, D_out), lambda i: (0, 0)),    # b2: VMEM-resident
        ],
        out_specs=pl.BlockSpec((TB, D_out), lambda i: (i, 0)),  # narrow output
        compiler_params=pltpu.CompilerParams(
            dimension_semantics=("parallel",),             # megacore sharding
        ),
        cost_estimate=pl.CostEstimate(
            flops=flops,
            transcendentals=Bp * D_out,                    # exp
            bytes_accessed=bytes_accessed,
        ),
    )(x_in, w1_bf, b1_f32, w2_bf, b2_f32)

    return out if Bp == B else out[:B]


def init_policy_params(key, input_dim, output_dim, hidden=128):
    """Deterministic init mimicking torch.nn.Linear default (uniform +/- 1/sqrt(fan_in))."""
    k1, k2, k3, k4 = jax.random.split(key, 4)
    lim1 = 1.0 / jnp.sqrt(input_dim)
    lim2 = 1.0 / jnp.sqrt(hidden)
    w1 = jax.random.uniform(k1, (input_dim, hidden), jnp.float32, -lim1, lim1)
    b1 = jax.random.uniform(k2, (1, hidden), jnp.float32, -lim1, lim1)
    w2 = jax.random.uniform(k3, (hidden, output_dim), jnp.float32, -lim2, lim2)
    b2 = jax.random.uniform(k4, (1, output_dim), jnp.float32, -lim2, lim2)
    return w1, b1, w2, b2


if __name__ == "__main__":
    key = jax.random.PRNGKey(0)
    batch, input_dim, output_dim = 8, 32, 16

    k_x, k_p = jax.random.split(key)
    x = jax.random.normal(k_x, (batch, input_dim), jnp.float32)
    w1, b1, w2, b2 = init_policy_params(k_p, input_dim, output_dim)

    params = prepare_policy_params(w1, b1, w2, b2)   # one-time prep (hoisted)
    probs = policy_forward(x, params)
    probs = jax.block_until_ready(probs)

    # Reference check in plain JAX (f32). Kernel uses bf16 matmul operands with
    # f32 accumulation, so the value tolerance is relaxed; normalization is exact.
    h_ref = jnp.maximum(x @ w1 + b1, 0.0)
    logits_ref = h_ref @ w2 + b2
    ref = jax.nn.softmax(logits_ref, axis=-1)

    assert probs.shape == (batch, output_dim)
    assert bool(jnp.all(probs >= 0.0))
    assert jnp.allclose(jnp.sum(probs, axis=-1), 1.0, atol=1e-3)
    assert jnp.allclose(probs, ref, atol=2e-2)

    print("KERNEL_OK")
</pallas_src>

<mosaic_0001>
module attributes {stable_mosaic.version = 11 : i64} {
  func.func @policy_kernel(%arg0: i32, %arg1: memref<16x32xf32, #tpu.memory_space<vmem>>, %arg2: memref<32x128xbf16, #tpu.memory_space<vmem>>, %arg3: memref<1x128xf32, #tpu.memory_space<vmem>>, %arg4: memref<128x16xbf16, #tpu.memory_space<vmem>>, %arg5: memref<1x16xf32, #tpu.memory_space<vmem>>, %arg6: memref<16x16xf32, #tpu.memory_space<vmem>>) attributes {dimension_semantics = [#tpu.dimension_semantics<parallel>], iteration_bounds = array<i64: 1>, scalar_prefetch = 0 : i64, scratch_operands = 0 : i64, tpu.core_type = #tpu.core_type<tc>, window_params = [{transform_indices = @transform_0, window_bounds = array<i64: 16, 32>}, {pipeline_mode = #tpu.pipeline_mode<synchronous>, transform_indices = @transform_1, window_bounds = array<i64: 32, 128>}, {pipeline_mode = #tpu.pipeline_mode<synchronous>, transform_indices = @transform_2, window_bounds = array<i64: 1, 128>}, {pipeline_mode = #tpu.pipeline_mode<synchronous>, transform_indices = @transform_3, window_bounds = array<i64: 128, 16>}, {pipeline_mode = #tpu.pipeline_mode<synchronous>, transform_indices = @transform_4, window_bounds = array<i64: 1, 16>}, {transform_indices = @transform_5, window_bounds = array<i64: 16, 16>}]} {
    %c0 = arith.constant 0 : index
    %c0_0 = arith.constant 0 : index
    %0 = vector.load %arg1[%c0, %c0_0] : memref<16x32xf32, #tpu.memory_space<vmem>>, vector<16x32xf32>
    %1 = arith.truncf %0 : vector<16x32xf32> to vector<16x32xbf16>
    %c0_1 = arith.constant 0 : index
    %c0_2 = arith.constant 0 : index
    %2 = vector.load %arg2[%c0_1, %c0_2] : memref<32x128xbf16, #tpu.memory_space<vmem>>, vector<32x128xbf16>
    %cst = arith.constant dense<0.000000e+00> : vector<16x128xf32>
    %3 = tpu.matmul %1, %2, %cst {dimension_numbers = #tpu.dot_dimension_numbers<[1], [0], [0], [1], [0, 0, 1, 1], [], []>} : vector<16x32xbf16>, vector<32x128xbf16>, vector<16x128xf32> -> vector<16x128xf32>
    %c0_3 = arith.constant 0 : index
    %c0_4 = arith.constant 0 : index
    %4 = vector.load %arg3[%c0_3, %c0_4] : memref<1x128xf32, #tpu.memory_space<vmem>>, vector<1x128xf32>
    %5 = vector.broadcast %4 : vector<1x128xf32> to vector<16x128xf32>
    %6 = arith.addf %3, %5 : vector<16x128xf32>
    %cst_5 = arith.constant 0.000000e+00 : f32
    %7 = vector.broadcast %cst_5 : f32 to vector<16x128xf32>
    %8 = arith.maximumf %6, %7 : vector<16x128xf32>
    %9 = arith.truncf %8 : vector<16x128xf32> to vector<16x128xbf16>
    %c0_6 = arith.constant 0 : index
    %c0_7 = arith.constant 0 : index
    %10 = vector.load %arg4[%c0_6, %c0_7] : memref<128x16xbf16, #tpu.memory_space<vmem>>, vector<128x16xbf16>
    %cst_8 = arith.constant dense<0.000000e+00> : vector<16x16xf32>
    %11 = tpu.matmul %9, %10, %cst_8 {dimension_numbers = #tpu.dot_dimension_numbers<[1], [0], [0], [1], [0, 0, 1, 1], [], []>} : vector<16x128xbf16>, vector<128x16xbf16>, vector<16x16xf32> -> vector<16x16xf32>
    %c0_9 = arith.constant 0 : index
    %c0_10 = arith.constant 0 : index
    %12 = vector.load %arg5[%c0_9, %c0_10] : memref<1x16xf32, #tpu.memory_space<vmem>>, vector<1x16xf32>
    %13 = vector.broadcast %12 : vector<1x16xf32> to vector<16x16xf32>
    %14 = arith.addf %11, %13 : vector<16x16xf32>
    %cst_11 = arith.constant dense<0xFF800000> : vector<16xf32>
    %15 = vector.multi_reduction <maximumf>, %14, %cst_11 [1] : vector<16x16xf32> to vector<16xf32>
    %16 = vector.shape_cast %15 : vector<16xf32> to vector<16x1xf32>
    %17 = vector.broadcast %16 : vector<16x1xf32> to vector<16x16xf32>
    %18 = arith.subf %14, %17 : vector<16x16xf32>
    %19 = math.exp %18 : vector<16x16xf32>
    %cst_12 = arith.constant dense<0.000000e+00> : vector<16xf32>
    %20 = vector.multi_reduction <add>, %19, %cst_12 [1] : vector<16x16xf32> to vector<16xf32>
    %21 = vector.shape_cast %20 : vector<16xf32> to vector<16x1xf32>
    %22 = vector.broadcast %21 : vector<16x1xf32> to vector<16x16xf32>
    %23 = arith.divf %19, %22 : vector<16x16xf32>
    %c0_13 = arith.constant 0 : index
    %c0_14 = arith.constant 0 : index
    %24 = vector.load %arg6[%c0_13, %c0_14] : memref<16x16xf32, #tpu.memory_space<vmem>>, vector<16x16xf32>
    tpu.vector_store %arg6[%c0_13, %c0_14], %23 {strides = array<i32>} : memref<16x16xf32, #tpu.memory_space<vmem>>, vector<16x16xf32>,
    return
  }
  func.func @transform_0(%arg0: i32) -> (i32, i32) {
    %c0_i32 = arith.constant 0 : i32
    %c0_i32_0 = arith.constant 0 : i32
    return %arg0, %c0_i32 : i32, i32
  }
  func.func @transform_1(%arg0: i32) -> (i32, i32) {
    %c0_i32 = arith.constant 0 : i32
    %c0_i32_0 = arith.constant 0 : i32
    %c0_i32_1 = arith.constant 0 : i32
    return %c0_i32, %c0_i32_0 : i32, i32
  }
  func.func @transform_2(%arg0: i32) -> (i32, i32) {
    %c0_i32 = arith.constant 0 : i32
    %c0_i32_0 = arith.constant 0 : i32
    %c0_i32_1 = arith.constant 0 : i32
    return %c0_i32, %c0_i32_0 : i32, i32
  }
  func.func @transform_3(%arg0: i32) -> (i32, i32) {
    %c0_i32 = arith.constant 0 : i32
    %c0_i32_0 = arith.constant 0 : i32
    %c0_i32_1 = arith.constant 0 : i32
    return %c0_i32, %c0_i32_0 : i32, i32
  }
  func.func @transform_4(%arg0: i32) -> (i32, i32) {
    %c0_i32 = arith.constant 0 : i32
    %c0_i32_0 = arith.constant 0 : i32
    %c0_i32_1 = arith.constant 0 : i32
    return %c0_i32, %c0_i32_0 : i32, i32
  }
  func.func @transform_5(%arg0: i32) -> (i32, i32) {
    %c0_i32 = arith.constant 0 : i32
    %c0_i32_0 = arith.constant 0 : i32
    return %arg0, %c0_i32 : i32, i32
  }
}

</mosaic_0001>

<llo_original>
// kernel: tpu_custom_call.1
$region0: #{tpu_custom_call.1}
  #allocation0 [shape = 'u32[]', space=smem, size = 0x4, offset = 0x4, fixed_abs, tag = 'smem constant byte address 0x4 - core index']
  #allocation1 [shape = 'u32[72,128]{1,0:T(1,128)}', space=vmem, size = 0x9000, scoped, tag = 'internal scratch']
  %s0 = inlined_call_operand.vmem [shape: f32[16,32], index: 0, kind: input, shape index: {}]
  %s1 = inlined_call_operand.vmem [shape: bf16[32,128], index: 1, kind: input, shape index: {}]
  %s2 = inlined_call_operand.vmem [shape: f32[1,128], index: 2, kind: input, shape index: {}]
  %s3 = inlined_call_operand.vmem [shape: bf16[128,16], index: 3, kind: input, shape index: {}]
  %s4 = inlined_call_operand.vmem [shape: f32[1,16], index: 4, kind: input, shape index: {}]
  %s5 = inlined_call_operand.hbm [shape: f32[16,16], index: 5, kind: output, shape index: {}]
  %s6 = sld [smem:[#allocation0]]
  $region30: #{tpu_custom_call.1} parent=0
    _
  %s8 = ssub.s32 1, %s6
  %s9 = scalar_select 0, %s8, %s6
  $region1: #{tpu_custom_call.1} parent=0
    #allocation2 [shape = 'u8[8192]{0}', space=vmem, size = 0x2000, scoped, tag = 'output window, operand 0, single buffered']
    #allocation3 [shape = 's32[1]{0}', space=sflag, size = 0x4, scoped, tag = 'scoped memory for tpu_custom_call.1']
    %10 = vsyncpa [#allocation3], 0
    // Predicated region
    $region2: #{tpu_custom_call.1} parent=1 // pred_check
      _
    $region3: #{tpu_custom_call.1} parent=1 // pred_check_branch
      %12 = sbr.rel (0) target = $region5
    $region4: #{tpu_custom_call.1} parent=1 // pred_region
      _
    $region5: #{tpu_custom_call.1} parent=1 // pred_fallthru
      _
    // Predicated region
    $region6: #{tpu_custom_call.1} parent=1 // pred_check
      _
    $region7: #{tpu_custom_call.1} parent=1 // pred_check_branch
      %14 = sbr.rel (0) target = $region9
    $region8: #{tpu_custom_call.1} parent=1 // pred_region
      _
    $region9: #{tpu_custom_call.1} parent=1 // pred_fallthru
      _
    // Predicated region
    $region10: #{tpu_custom_call.1} parent=1 // pred_check
      _
    $region11: #{tpu_custom_call.1} parent=1 // pred_check_branch
      %16 = sbr.rel (0) target = $region13
    $region12: #{tpu_custom_call.1} parent=1 // pred_region
      _
    $region13: #{tpu_custom_call.1} parent=1 // pred_fallthru
      _
    // Predicated region
    $region14: #{tpu_custom_call.1} parent=1 // pred_check
      _
    $region15: #{tpu_custom_call.1} parent=1 // pred_check_branch
      %18 = sbr.rel (0) target = $region17
    $region16: #{tpu_custom_call.1} parent=1 // pred_region
      _
    $region17: #{tpu_custom_call.1} parent=1 // pred_fallthru
      _
    // Predicated region
    $region18: #{tpu_custom_call.1} parent=1 // pred_check
      _
    $region19: #{tpu_custom_call.1} parent=1 // pred_check_branch
      %20 = sbr.rel (0) target = $region21
    $region20: #{tpu_custom_call.1} parent=1 // pred_region
      _
    $region21: #{tpu_custom_call.1} parent=1 // pred_fallthru
      _
    %v22 = vld [vmem:[%s0] sm:$0xff]
    %v23 = vld [vmem:[%s0 + $0x8] sm:$0xff]
    %v24 = vpack.c.bf16 %v23, %v22
    %v25 = vld [vmem:[%s1] sm:$0xf]
    %v26 = vld [vmem:[%s1 + $0x4] sm:$0xf]
    %v27 = vld [vmem:[%s1 + $0x8] sm:$0xf]
    %v28 = vld [vmem:[%s1 + $0xc] sm:$0xf]
    %v29 = vld [vmem:[%s2] sm:$0x1]
    %v31 = vperm.slane %v29, 0
    %v37 = vunpack.c.l.b16 %v25
    %v38 = vunpack.c.l.b16 %v26
    %v39 = vunpack.c.l.b16 %v27
    %v40 = vunpack.c.l.b16 %v28
    %v41 = vpack.c.b16 %v38, %v37
    %v42 = vpack.c.b16 %v40, %v39
    %vm45 = vcmask 261120
    %v47 = vsel %vm45, %v24, 0
    %49 = vmatpush.bf16.msra.mxu0 0
    %50 = vmatpush.bf16.msra.mxu0 0
    %51 = vmatpush.bf16.msra.mxu0 0
    %52 = vmatpush.bf16.msra.mxu0 0
    %53 = vmatpush.bf16.msra.mxu0 0
    %54 = vmatpush.bf16.msra.mxu0 0
    %55 = vmatpush.bf16.msra.mxu0 %v42
    %56 = vmatpush.bf16.msra.mxu0 %v41
    %57 = vmatmul.bf16.gmra.mxu0 %v47
    %v58 = vpop.f32.mrf.mxu0
    %v59 = vadd.f32 %v31, %v58
    %v60 = vpop.f32.mrf.mxu0
    %v61 = vadd.f32 %v31, %v60
    %62 = vdwg.mxu0
    %v63 = vmax.f32 %v59, 0.0
    %v64 = vmax.f32 %v61, 0.0
    %v65 = vpack.c.bf16 %v64, %v63
    %v66 = vld [vmem:[%s3] sm:$0xf]
    %v67 = vld [vmem:[%s3 + $0x4] sm:$0xf]
    %v68 = vld [vmem:[%s3 + $0x8] sm:$0xf]
    %v69 = vld [vmem:[%s3 + $0xc] sm:$0xf]
    %v70 = vld [vmem:[%s3 + $0x10] sm:$0xf]
    %v71 = vld [vmem:[%s3 + $0x14] sm:$0xf]
    %v72 = vld [vmem:[%s3 + $0x18] sm:$0xf]
    %v73 = vld [vmem:[%s3 + $0x1c] sm:$0xf]
    %v74 = vld [vmem:[%s3 + $0x20] sm:$0xf]
    %v75 = vld [vmem:[%s3 + $0x24] sm:$0xf]
    %v76 = vld [vmem:[%s3 + $0x28] sm:$0xf]
    %v77 = vld [vmem:[%s3 + $0x2c] sm:$0xf]
    %v78 = vld [vmem:[%s3 + $0x30] sm:$0xf]
    %v79 = vld [vmem:[%s3 + $0x34] sm:$0xf]
    %v80 = vld [vmem:[%s3 + $0x38] sm:$0xf]
    %v81 = vld [vmem:[%s3 + $0x3c] sm:$0xf]
    %v82 = vld [vmem:[%s4] sm:$0x1]
    %v84 = vperm.slane %v82, 0
    %v102 = vunpack.c.l.b16 %v66
    %v103 = vunpack.c.l.b16 %v67
    %v104 = vunpack.c.l.b16 %v68
    %v105 = vunpack.c.l.b16 %v69
    %v106 = vunpack.c.l.b16 %v70
    %v107 = vunpack.c.l.b16 %v71
    %v108 = vunpack.c.l.b16 %v72
    %v109 = vunpack.c.l.b16 %v73
    %v110 = vunpack.c.l.b16 %v74
    %v111 = vunpack.c.l.b16 %v75
    %v112 = vunpack.c.l.b16 %v76
    %v113 = vunpack.c.l.b16 %v77
    %v114 = vunpack.c.l.b16 %v78
    %v115 = vunpack.c.l.b16 %v79
    %v116 = vunpack.c.l.b16 %v80
    %v117 = vunpack.c.l.b16 %v81
    %v118 = vpack.c.b16 %v103, %v102
    %v119 = vpack.c.b16 %v105, %v104
    %v120 = vpack.c.b16 %v107, %v106
    %v121 = vpack.c.b16 %v109, %v108
    %v122 = vpack.c.b16 %v111, %v110
    %v123 = vpack.c.b16 %v113, %v112
    %v124 = vpack.c.b16 %v115, %v114
    %v125 = vpack.c.b16 %v117, %v116
    %134 = vmatpush.bf16.msra.mxu0 %v125
    %135 = vmatpush.bf16.msra.mxu0 %v124
    %136 = vmatpush.bf16.msra.mxu0 %v123
    %137 = vmatpush.bf16.msra.mxu0 %v122
    %138 = vmatpush.bf16.msra.mxu0 %v121
    %139 = vmatpush.bf16.msra.mxu0 %v120
    %140 = vmatpush.bf16.msra.mxu0 %v119
    %141 = vmatpush.bf16.msra.mxu0 %v118
    %142 = vmatmul.bf16.gmra.mxu0 %v65
    %v143 = vpop.f32.mrf.mxu0
    %v144 = vadd.f32 %v84, %v143
    %v145 = vpop.f32.mrf.mxu0
    %v146 = vadd.f32 %v84, %v145
    %147 = vdwg.mxu0
    %vm148 = vcmask 130048
    %v149 = vsel %vm148, %v144, -inf
    %150 = vmax.xlane.f32.xlu0 %v149
    %v151 = vpop.xlane.xlu0 %150
    %v152 = vsel %vm148, %v146, -inf
    %153 = vmax.xlane.f32.xlu0 %v152
    %v154 = vpop.xlane.xlu0 %153
    %v155 = vsub.f32 %v144, %v151
    %v156 = vsub.f32 %v146, %v154
    %v157 = vmul.f32 %v155, 1.442695
    %v158 = vpow.pop %v157
    %v159 = vmul.f32 %v156, 1.442695
    %v160 = vpow.pop %v159
    %v161 = vsel %vm148, %v158, 0.0
    %162 = vadd.xlane.f32.xlu0 %v161
    %v163 = vpop.xlane.xlu0 %162
    %v164 = vsel %vm148, %v160, 0.0
    %165 = vadd.xlane.f32.xlu0 %v164
    %v166 = vpop.xlane.xlu0 %165
    %v167 = vrcp.pop %v163
    %v168 = vmul.f32 %v163, %v167
    %v169 = vsub.f32 1.0, %v168
    %v170 = vmul.f32 %v167, %v169
    %v171 = vadd.f32 %v167, %v170
    %vm172 = vweird.f32 %v163
    %vm173 = vweird.f32 %v167
    %vm174 = vmor %vm172, %vm173
    %v175 = vsel %vm174, %v167, %v171
    %v176 = vand.u32 2147483647, %v163
    %vm177 = vcmp.eq.f32.partialorder %v176, 8.507059e+37
    %v178 = vand.u32 %v163, 2147483648
    %v179 = vor.u32 1.1754944e-38, %v178
    %v180 = vsel %vm177, %v179, %v175
    %v181 = vmul.f32 %v158, %v180
    %v182 = vrcp.pop %v166
    %v183 = vmul.f32 %v166, %v182
    %v184 = vsub.f32 1.0, %v183
    %v185 = vmul.f32 %v182, %v184
    %v186 = vadd.f32 %v182, %v185
    %vm187 = vweird.f32 %v166
    %vm188 = vweird.f32 %v182
    %vm189 = vmor %vm187, %vm188
    %v190 = vsel %vm189, %v182, %v186
    %v191 = vand.u32 2147483647, %v166
    %vm192 = vcmp.eq.f32.partialorder %v191, 8.507059e+37
    %v193 = vand.u32 %v166, 2147483648
    %v194 = vor.u32 1.1754944e-38, %v193
    %v195 = vsel %vm192, %v194, %v190
    %v196 = vmul.f32 %v160, %v195
    %197 = vst.msk [vmem:[#allocation2] sm:$0xff] %vm148, %v181
    %198 = vst.msk [vmem:[#allocation2 + $0x8] sm:$0xff] %vm148, %v196
    // Predicated region
    $region22: #{tpu_custom_call.1} parent=1 // pred_check
      _
    $region23: #{tpu_custom_call.1} parent=1 // pred_check_branch
      %200 = sbr.rel (0) target = $region25
    $region24: #{tpu_custom_call.1} parent=1 // pred_region
      %202 = vsyncadd [#allocation3], 0
      %s203 = sshll.u32 [#allocation2], 4
      %s204 = int_to_ptr.vmem [resolvable:$true] %s203
      %s205 = sshll.u32 %s5, 4
      %s206 = int_to_ptr.hbm [resolvable:$true] %s205
      %211 = dma.vmem_to_hbm [thread:$0]  %s204, 256, %s206, [#allocation3], 128, 128, 8
    $region25: #{tpu_custom_call.1} parent=1 // pred_fallthru
      _
    // Predicated region
    $region26: #{tpu_custom_call.1} parent=1 // pred_check
      _
    $region27: #{tpu_custom_call.1} parent=1 // pred_check_branch
      %213 = sbr.rel (0) target = $region29
    $region28: #{tpu_custom_call.1} parent=1 // pred_region
      %215 = dma.done [#allocation3], 256
    $region29: #{tpu_custom_call.1} parent=1 // pred_fallthru
      _
    %216 = vsyncpa [#allocation3], 1

</llo_original>
